<compile_context>
chip_gen: v5e
topology: v5e:2x2
jax: 0.10.0
libtpu: 0.0.40
codegen_flags: <defaults>
</compile_context>

<pallas_src>
import functools

import jax
import jax.numpy as jnp
from jax import lax
from jax.experimental import pallas as pl
from jax.experimental.pallas import tpu as pltpu

BN_EPS = 1e-5          # nn.BatchNorm2d default eps
LEAKY_SLOPE = 0.01     # nn.LeakyReLU default negative_slope
LANE = 128
_VMEM_CEILING = 48 * 1024 * 1024   # safe on v7x (64 MiB physical); v5e/v6e have 128 MiB


def _round_up(x, m):
    return (x + m - 1) // m * m


# ---------------------------------------------------------------------------
# Pass 1 (fused path): streamed per-channel sum / sum-of-squares of the conv
# output.  No conv intermediate is written — it is recomputed in pass 2.
# ---------------------------------------------------------------------------
def conv_stats_kernel(patches_ref, w_ref, sum_ref, sq_ref):
    i = pl.program_id(0)
    acc = jnp.dot(patches_ref[...], w_ref[...],
                  preferred_element_type=jnp.float32)

    @pl.when(i == 0)
    def _():
        sum_ref[...] = jnp.zeros_like(sum_ref)
        sq_ref[...] = jnp.zeros_like(sq_ref)

    # Padded M rows are all-zero patches -> contribute exactly 0 to both stats,
    # which keeps the bias-drop / divide-by-true-m normalisation exact.
    sum_ref[...] += jnp.sum(acc, axis=0, keepdims=True)
    sq_ref[...] += jnp.sum(acc * acc, axis=0, keepdims=True)


# ---------------------------------------------------------------------------
# Pass 1 (large-K fallback): also spill the conv tile, in compute dtype (bf16
# by default — half the HBM stream of the old f32 intermediate).
# ---------------------------------------------------------------------------
def conv_stats_store_kernel(patches_ref, w_ref, conv_ref, sum_ref, sq_ref):
    i = pl.program_id(0)
    acc = jnp.dot(patches_ref[...], w_ref[...],
                  preferred_element_type=jnp.float32)
    conv_ref[...] = acc.astype(conv_ref.dtype)

    @pl.when(i == 0)
    def _():
        sum_ref[...] = jnp.zeros_like(sum_ref)
        sq_ref[...] = jnp.zeros_like(sq_ref)

    sum_ref[...] += jnp.sum(acc, axis=0, keepdims=True)
    sq_ref[...] += jnp.sum(acc * acc, axis=0, keepdims=True)


# ---------------------------------------------------------------------------
# Pass 2 (fused path): recompute the conv tile on the MXU, fold BN into two
# per-channel scalars, LeakyReLU, lane-dense store.
# ---------------------------------------------------------------------------
def fused_conv_bn_act_kernel(patches_ref, w_ref, sum_ref, sq_ref, gamma_ref,
                             beta_ref, out_ref, *, m_total):
    acc = jnp.dot(patches_ref[...], w_ref[...],
                  preferred_element_type=jnp.float32)
    inv_m = 1.0 / m_total
    mean = sum_ref[...] * inv_m
    var = sq_ref[...] * inv_m - mean * mean        # single-pass var, f32 accum
    a = gamma_ref[...] * lax.rsqrt(var + BN_EPS)   # per-channel scale
    b = beta_ref[...] - mean * a                   # per-channel shift
    y = acc * a + b                                # 2 VPU ops/elem
    out_ref[...] = jnp.where(y >= 0, y, LEAKY_SLOPE * y).astype(out_ref.dtype)


# ---------------------------------------------------------------------------
# Pass 2 (large-K fallback): read the stored conv intermediate instead.
# ---------------------------------------------------------------------------
def bn_act_kernel(conv_ref, sum_ref, sq_ref, gamma_ref, beta_ref, out_ref, *,
                  m_total):
    x = conv_ref[...].astype(jnp.float32)
    inv_m = 1.0 / m_total
    mean = sum_ref[...] * inv_m
    var = sq_ref[...] * inv_m - mean * mean
    a = gamma_ref[...] * lax.rsqrt(var + BN_EPS)
    b = beta_ref[...] - mean * a
    y = x * a + b
    out_ref[...] = jnp.where(y >= 0, y, LEAKY_SLOPE * y).astype(out_ref.dtype)


# ---------------------------------------------------------------------------
# Layout glue (plain JAX): im2col patch extraction in channels-last layout.
# ---------------------------------------------------------------------------
def _im2col_nhwc(x_nhwc, kh, kw, pad):
    """(N,H,W,C) -> (N*Ho*Wo, kh*kw*C) with feature order (i, j, c)."""
    n, h, w, c = x_nhwc.shape
    xp = jnp.pad(x_nhwc, ((0, 0), (pad, pad), (pad, pad), (0, 0)))
    ho = h + 2 * pad - kh + 1
    wo = w + 2 * pad - kw + 1
    slabs = []
    for i in range(kh):
        for j in range(kw):
            slabs.append(xp[:, i:i + ho, j:j + wo, :])     # (N, Ho, Wo, C)
    patches = jnp.stack(slabs, axis=3)                      # (N, Ho, Wo, kh*kw, C)
    return patches.reshape(n * ho * wo, kh * kw * c), (n, ho, wo)


def _choose_tiling(m, k, cout_pad, in_itemsize, out_itemsize, tm_request, fused):
    """Pick the biggest M tile whose double-buffered footprint fits the VMEM budget."""
    tm_upper = max(_round_up(m, 8), 8)
    fit_limit = int(0.75 * _VMEM_CEILING)
    candidates = sorted({int(tm_request), 2048, 1024, 512, 256, 128}, reverse=True)
    tm_eff, need = 128, 0
    for tm in candidates:
        t = min(_round_up(max(tm, 8), 8), tm_upper)
        n_bytes = (2 * t * k * in_itemsize                    # patch tiles (x2 buffers)
                   + k * cout_pad * in_itemsize               # resident weights
                   + 2 * t * cout_pad * out_itemsize          # output tiles (x2 buffers)
                   + (0 if fused else 2 * t * cout_pad * in_itemsize)
                   + 16 * cout_pad * 4)                       # stats / gamma / beta rows
        tm_eff, need = t, n_bytes
        if n_bytes <= fit_limit:
            break                                             # biggest tile that fits
    vmem_limit = int(min(_VMEM_CEILING, max(2 * need, 16 * 1024 * 1024)))
    return tm_eff, vmem_limit


def basic_block_forward_nhwc(x_nhwc, conv_w, conv_b, gamma, beta, *,
                             padding, compute_dtype=jnp.bfloat16,
                             out_dtype=jnp.float32, tm=1024):
    """Channels-last BasicBlock. x_nhwc: (N,H,W,Cin); conv_w: (Cout,Cin,kh,kw)."""
    del conv_b  # exactly cancelled by training-mode BN mean subtraction
    cout, cin, kh, kw = conv_w.shape
    patches, (n, ho, wo) = _im2col_nhwc(x_nhwc, kh, kw, padding)
    m, k = patches.shape

    # v6e/v7x MXUs are 2x256^2: pad the N dim to 256 once Cout > 128; 128 otherwise.
    cout_pad = _round_up(cout, 256 if cout > LANE else LANE)

    in_itemsize = jnp.dtype(compute_dtype).itemsize
    out_itemsize = jnp.dtype(out_dtype).itemsize

    # Fuse (recompute conv in pass 2) when re-reading K bytes/row of patches is cheaper
    # than the conv-intermediate round trip; always true for shallow-Cin blocks.
    fused = k <= max(2 * cout_pad, 512)

    tm_eff, vmem_limit = _choose_tiling(m, k, cout_pad, in_itemsize,
                                        out_itemsize, tm, fused)
    m_pad = _round_up(m, tm_eff)
    num_tiles = m_pad // tm_eff

    patches = jnp.pad(patches, ((0, m_pad - m), (0, 0))).astype(compute_dtype)
    # (Cout, Cin, kh, kw) -> (kh, kw, Cin, Cout) -> (K, Cout), pad Cout for lane density.
    w_mat = jnp.transpose(conv_w, (2, 3, 1, 0)).reshape(k, cout)
    w_mat = jnp.pad(w_mat, ((0, 0), (0, cout_pad - cout))).astype(compute_dtype)
    g_row = jnp.pad(gamma.reshape(1, cout).astype(jnp.float32),
                    ((0, 0), (0, cout_pad - cout)))
    b_row = jnp.pad(beta.reshape(1, cout).astype(jnp.float32),
                    ((0, 0), (0, cout_pad - cout)))

    patch_spec = pl.BlockSpec((tm_eff, k), lambda i: (i, 0))
    # Resident weights: double-buffering a constant-index operand is pure VMEM waste,
    # but only worth declaring when the weight slab is large (saves K*Cout_pad bytes).
    if k * cout_pad * in_itemsize > (1 << 20):
        w_spec = pl.BlockSpec((k, cout_pad), lambda i: (0, 0),
                              pipeline_mode=pl.Buffered(1))
    else:
        w_spec = pl.BlockSpec((k, cout_pad), lambda i: (0, 0))
    stat_spec = pl.BlockSpec((1, cout_pad), lambda i: (0, 0))
    conv_tile_spec = pl.BlockSpec((tm_eff, cout_pad), lambda i: (i, 0))

    params_p1 = pltpu.CompilerParams(
        dimension_semantics=("arbitrary",),     # stats accumulate across tiles
        vmem_limit_bytes=vmem_limit)
    params_p2 = pltpu.CompilerParams(
        dimension_semantics=("parallel",),      # independent tiles -> megacore
        vmem_limit_bytes=vmem_limit)

    if fused:
        cost1 = pl.CostEstimate(
            flops=2 * m_pad * k * cout_pad, transcendentals=0,
            bytes_accessed=(m_pad * k * in_itemsize + k * cout_pad * in_itemsize
                            + 2 * cout_pad * 4))
        ch_sum, ch_sq = pl.pallas_call(
            conv_stats_kernel,
            out_shape=(jax.ShapeDtypeStruct((1, cout_pad), jnp.float32),
                       jax.ShapeDtypeStruct((1, cout_pad), jnp.float32)),
            grid_spec=pltpu.PrefetchScalarGridSpec(
                num_scalar_prefetch=0, grid=(num_tiles,),
                in_specs=[patch_spec, w_spec],
                out_specs=(stat_spec, stat_spec)),
            compiler_params=params_p1,
            cost_estimate=cost1,
        )(patches, w_mat)

        cost2 = pl.CostEstimate(
            flops=2 * m_pad * k * cout_pad + 4 * m_pad * cout_pad,
            transcendentals=cout_pad,
            bytes_accessed=(m_pad * k * in_itemsize + k * cout_pad * in_itemsize
                            + m_pad * cout_pad * out_itemsize + 4 * cout_pad * 4))
        out_flat = pl.pallas_call(
            functools.partial(fused_conv_bn_act_kernel, m_total=float(m)),
            out_shape=jax.ShapeDtypeStruct((m_pad, cout_pad), out_dtype),
            grid_spec=pltpu.PrefetchScalarGridSpec(
                num_scalar_prefetch=0, grid=(num_tiles,),
                in_specs=[patch_spec, w_spec, stat_spec, stat_spec,
                          stat_spec, stat_spec],
                out_specs=conv_tile_spec),
            compiler_params=params_p2,
            cost_estimate=cost2,
        )(patches, w_mat, ch_sum, ch_sq, g_row, b_row)
    else:
        conv_dtype = compute_dtype
        conv_bytes = jnp.dtype(conv_dtype).itemsize
        cost1 = pl.CostEstimate(
            flops=2 * m_pad * k * cout_pad, transcendentals=0,
            bytes_accessed=(m_pad * k * in_itemsize + k * cout_pad * in_itemsize
                            + m_pad * cout_pad * conv_bytes + 2 * cout_pad * 4))
        conv_out, ch_sum, ch_sq = pl.pallas_call(
            conv_stats_store_kernel,
            out_shape=(jax.ShapeDtypeStruct((m_pad, cout_pad), conv_dtype),
                       jax.ShapeDtypeStruct((1, cout_pad), jnp.float32),
                       jax.ShapeDtypeStruct((1, cout_pad), jnp.float32)),
            grid_spec=pltpu.PrefetchScalarGridSpec(
                num_scalar_prefetch=0, grid=(num_tiles,),
                in_specs=[patch_spec, w_spec],
                out_specs=(conv_tile_spec, stat_spec, stat_spec)),
            compiler_params=params_p1,
            cost_estimate=cost1,
        )(patches, w_mat)

        cost2 = pl.CostEstimate(
            flops=4 * m_pad * cout_pad, transcendentals=cout_pad,
            bytes_accessed=(m_pad * cout_pad * conv_bytes
                            + m_pad * cout_pad * out_itemsize + 4 * cout_pad * 4))
        out_flat = pl.pallas_call(
            functools.partial(bn_act_kernel, m_total=float(m)),
            out_shape=jax.ShapeDtypeStruct((m_pad, cout_pad), out_dtype),
            grid_spec=pltpu.PrefetchScalarGridSpec(
                num_scalar_prefetch=0, grid=(num_tiles,),
                in_specs=[conv_tile_spec, stat_spec, stat_spec,
                          stat_spec, stat_spec],
                out_specs=conv_tile_spec),
            compiler_params=params_p2,
            cost_estimate=cost2,
        )(conv_out, ch_sum, ch_sq, g_row, b_row)

    # Slice off M / Cout padding; stay channels-last.
    return out_flat[:m, :cout].reshape(n, ho, wo, cout)


def basic_block_forward(x_nchw, conv_w, conv_b, gamma, beta, *, padding,
                        compute_dtype=jnp.bfloat16, out_dtype=jnp.float32,
                        tm=1024):
    """PyTorch-boundary wrapper: NCHW in / NCHW out (single transpose each way)."""
    x_nhwc = jnp.transpose(x_nchw, (0, 2, 3, 1))
    y = basic_block_forward_nhwc(x_nhwc, conv_w, conv_b, gamma, beta,
                                 padding=padding, compute_dtype=compute_dtype,
                                 out_dtype=out_dtype, tm=tm)
    return jnp.transpose(y, (0, 3, 1, 2))


def _reference_forward(x_nchw, conv_w, conv_b, gamma, beta, *, padding):
    """Pure-JAX f32 reference (Conv2d + training-mode BatchNorm2d + LeakyReLU)."""
    y = lax.conv_general_dilated(
        x_nchw, conv_w, window_strides=(1, 1),
        padding=[(padding, padding), (padding, padding)],
        dimension_numbers=("NCHW", "OIHW", "NCHW"))
    y = y + conv_b[None, :, None, None]
    mean = jnp.mean(y, axis=(0, 2, 3), keepdims=True)
    var = jnp.mean((y - mean) ** 2, axis=(0, 2, 3), keepdims=True)
    y = (y - mean) * lax.rsqrt(var + BN_EPS)
    y = y * gamma[None, :, None, None] + beta[None, :, None, None]
    return jnp.where(y >= 0, y, LEAKY_SLOPE * y)


if __name__ == "__main__":
    # Small shapes consistent with the module: N=2, Cin=4, H=W=16, Cout=8, k=3, padding=1.
    N, CIN, H, W = 2, 4, 16, 16
    COUT, KSIZE, PAD = 8, 3, 1

    key = jax.random.PRNGKey(0)
    kx, kwt, kb = jax.random.split(key, 3)

    x = jax.random.normal(kx, (N, CIN, H, W), dtype=jnp.float32)

    # Conv2d-style uniform fan_in init; BN gamma=1, beta=0.
    fan_in = CIN * KSIZE * KSIZE
    bound = 1.0 / (fan_in ** 0.5)
    conv_w = jax.random.uniform(kwt, (COUT, CIN, KSIZE, KSIZE),
                                minval=-bound, maxval=bound, dtype=jnp.float32)
    conv_b = jax.random.uniform(kb, (COUT,), minval=-bound, maxval=bound,
                                dtype=jnp.float32)
    gamma = jnp.ones((COUT,), dtype=jnp.float32)
    beta = jnp.zeros((COUT,), dtype=jnp.float32)

    ref = _reference_forward(x, conv_w, conv_b, gamma, beta, padding=PAD)

    # f32 MXU path: tight tolerance vs the f32 reference (also validates bias
    # cancellation, the streamed statistics, and the fused-recompute pass 2).
    out_f32 = basic_block_forward(x, conv_w, conv_b, gamma, beta, padding=PAD,
                                  compute_dtype=jnp.float32)
    out_f32 = jax.block_until_ready(out_f32)
    assert out_f32.shape == (N, COUT, H, W)
    assert jnp.allclose(out_f32, ref, rtol=1e-4, atol=1e-4), "f32 mismatch vs reference"

    # Default bf16-MXU path: bf16 operand rounding only (f32 accumulation throughout).
    out_bf16 = basic_block_forward(x, conv_w, conv_b, gamma, beta, padding=PAD,
                                   compute_dtype=jnp.bfloat16)
    out_bf16 = jax.block_until_ready(out_bf16)
    assert out_bf16.shape == (N, COUT, H, W)
    assert jnp.allclose(out_bf16, ref, rtol=5e-2, atol=5e-2), "bf16 mismatch vs reference"

    print("KERNEL_OK")
</pallas_src>

<mosaic_0001>
module attributes {stable_mosaic.version = 11 : i64} {
  func.func @conv_stats_kernel(%arg0: i32, %arg1: memref<512x36xf32, #tpu.memory_space<vmem>>, %arg2: memref<36x128xf32, #tpu.memory_space<vmem>>, %arg3: memref<1x128xf32, #tpu.memory_space<vmem>>, %arg4: memref<1x128xf32, #tpu.memory_space<vmem>>) attributes {dimension_semantics = [#tpu.dimension_semantics<arbitrary>], iteration_bounds = array<i64: 1>, scalar_prefetch = 0 : i64, scratch_operands = 0 : i64, tpu.core_type = #tpu.core_type<tc>, window_params = [{transform_indices = @transform_0, window_bounds = array<i64: 512, 36>}, {pipeline_mode = #tpu.pipeline_mode<synchronous>, transform_indices = @transform_1, window_bounds = array<i64: 36, 128>}, {pipeline_mode = #tpu.pipeline_mode<synchronous>, transform_indices = @transform_2, window_bounds = array<i64: 1, 128>}, {pipeline_mode = #tpu.pipeline_mode<synchronous>, transform_indices = @transform_3, window_bounds = array<i64: 1, 128>}]} {
    %c0 = arith.constant 0 : index
    %c0_0 = arith.constant 0 : index
    %0 = vector.load %arg1[%c0, %c0_0] : memref<512x36xf32, #tpu.memory_space<vmem>>, vector<512x36xf32>
    %c0_1 = arith.constant 0 : index
    %c0_2 = arith.constant 0 : index
    %1 = vector.load %arg2[%c0_1, %c0_2] : memref<36x128xf32, #tpu.memory_space<vmem>>, vector<36x128xf32>
    %cst = arith.constant dense<0.000000e+00> : vector<512x128xf32>
    %2 = tpu.matmul %0, %1, %cst {dimension_numbers = #tpu.dot_dimension_numbers<[1], [0], [0], [1], [0, 0, 1, 1], [], []>} : vector<512x36xf32>, vector<36x128xf32>, vector<512x128xf32> -> vector<512x128xf32>
    %c0_i32 = arith.constant 0 : i32
    %3 = arith.cmpi eq, %arg0, %c0_i32 : i32
    %4 = arith.extui %3 : i1 to i32
    %c0_i32_3 = arith.constant 0 : i32
    %5 = arith.cmpi ne, %4, %c0_i32_3 : i32
    scf.if %5 {
      %cst_14 = arith.constant 0.000000e+00 : f32
      %17 = vector.broadcast %cst_14 : f32 to vector<1x128xf32>
      %c0_15 = arith.constant 0 : index
      %c0_16 = arith.constant 0 : index
      %18 = vector.load %arg3[%c0_15, %c0_16] : memref<1x128xf32, #tpu.memory_space<vmem>>, vector<1x128xf32>
      tpu.vector_store %arg3[%c0_15, %c0_16], %17 {strides = array<i32>} : memref<1x128xf32, #tpu.memory_space<vmem>>, vector<1x128xf32>,
      %cst_17 = arith.constant 0.000000e+00 : f32
      %19 = vector.broadcast %cst_17 : f32 to vector<1x128xf32>
      %c0_18 = arith.constant 0 : index
      %c0_19 = arith.constant 0 : index
      %20 = vector.load %arg4[%c0_18, %c0_19] : memref<1x128xf32, #tpu.memory_space<vmem>>, vector<1x128xf32>
      tpu.vector_store %arg4[%c0_18, %c0_19], %19 {strides = array<i32>} : memref<1x128xf32, #tpu.memory_space<vmem>>, vector<1x128xf32>,
    } else {
    }
    %c0_4 = arith.constant 0 : index
    %c0_5 = arith.constant 0 : index
    %6 = vector.load %arg3[%c0_4, %c0_5] : memref<1x128xf32, #tpu.memory_space<vmem>>, vector<1x128xf32>
    %cst_6 = arith.constant dense<0.000000e+00> : vector<128xf32>
    %7 = vector.multi_reduction <add>, %2, %cst_6 [0] : vector<512x128xf32> to vector<128xf32>
    %8 = vector.shape_cast %7 : vector<128xf32> to vector<1x128xf32>
    %9 = arith.addf %6, %8 : vector<1x128xf32>
    %c0_7 = arith.constant 0 : index
    %c0_8 = arith.constant 0 : index
    %10 = vector.load %arg3[%c0_7, %c0_8] : memref<1x128xf32, #tpu.memory_space<vmem>>, vector<1x128xf32>
    tpu.vector_store %arg3[%c0_7, %c0_8], %9 {strides = array<i32>} : memref<1x128xf32, #tpu.memory_space<vmem>>, vector<1x128xf32>,
    %c0_9 = arith.constant 0 : index
    %c0_10 = arith.constant 0 : index
    %11 = vector.load %arg4[%c0_9, %c0_10] : memref<1x128xf32, #tpu.memory_space<vmem>>, vector<1x128xf32>
    %12 = arith.mulf %2, %2 : vector<512x128xf32>
    %cst_11 = arith.constant dense<0.000000e+00> : vector<128xf32>
    %13 = vector.multi_reduction <add>, %12, %cst_11 [0] : vector<512x128xf32> to vector<128xf32>
    %14 = vector.shape_cast %13 : vector<128xf32> to vector<1x128xf32>
    %15 = arith.addf %11, %14 : vector<1x128xf32>
    %c0_12 = arith.constant 0 : index
    %c0_13 = arith.constant 0 : index
    %16 = vector.load %arg4[%c0_12, %c0_13] : memref<1x128xf32, #tpu.memory_space<vmem>>, vector<1x128xf32>
    tpu.vector_store %arg4[%c0_12, %c0_13], %15 {strides = array<i32>} : memref<1x128xf32, #tpu.memory_space<vmem>>, vector<1x128xf32>,
    return
  }
  func.func @transform_0(%arg0: i32) -> (i32, i32) {
    %c0_i32 = arith.constant 0 : i32
    %c0_i32_0 = arith.constant 0 : i32
    return %arg0, %c0_i32 : i32, i32
  }
  func.func @transform_1(%arg0: i32) -> (i32, i32) {
    %c0_i32 = arith.constant 0 : i32
    %c0_i32_0 = arith.constant 0 : i32
    %c0_i32_1 = arith.constant 0 : i32
    return %c0_i32, %c0_i32_0 : i32, i32
  }
  func.func @transform_2(%arg0: i32) -> (i32, i32) {
    %c0_i32 = arith.constant 0 : i32
    %c0_i32_0 = arith.constant 0 : i32
    %c0_i32_1 = arith.constant 0 : i32
    return %c0_i32, %c0_i32_0 : i32, i32
  }
  func.func @transform_3(%arg0: i32) -> (i32, i32) {
    %c0_i32 = arith.constant 0 : i32
    %c0_i32_0 = arith.constant 0 : i32
    %c0_i32_1 = arith.constant 0 : i32
    return %c0_i32, %c0_i32_0 : i32, i32
  }
}

</mosaic_0001>

<llo_original>
// kernel: tpu_custom_call.1
$region0: #{tpu_custom_call.1}
  #allocation0 [shape = 'u32[]', space=smem, size = 0x4, offset = 0x4, fixed_abs, tag = 'smem constant byte address 0x4 - core index']
  #allocation1 [shape = 'u32[72,128]{1,0:T(1,128)}', space=vmem, size = 0x9000, scoped, tag = 'internal scratch']
  %s0 = inlined_call_operand.vmem [shape: f32[512,36], index: 0, kind: input, shape index: {}]
  %s1 = inlined_call_operand.vmem [shape: f32[36,128], index: 1, kind: input, shape index: {}]
  %s2 = inlined_call_operand.hbm [shape: f32[1,128], index: 2, kind: output, shape index: {0}]
  %s3 = inlined_call_operand.hbm [shape: f32[1,128], index: 3, kind: output, shape index: {1}]
  %4 = xla_tuple %s2, %s3
  %s5 = sld [smem:[#allocation0]]
  $region30: #{tpu_custom_call.1} parent=0
    _
  %s7 = ssub.s32 1, %s5
  %s8 = scalar_select 0, %s7, %s5
  $region1: #{tpu_custom_call.1} parent=0
    #allocation2 [shape = 'u8[512]{0}', space=vmem, size = 0x400, scoped, tag = 'output window, operand 0, single buffered']
    #allocation3 [shape = 's32[1]{0}', space=sflag, size = 0x4, scoped, tag = 'scoped memory for tpu_custom_call.1']
    #allocation4 [shape = 'u8[512]{0}', space=vmem, size = 0x400, scoped, tag = 'output window, operand 1, single buffered']
    #allocation5 [shape = 's32[1]{0}', space=sflag, size = 0x4, scoped, tag = 'scoped memory for tpu_custom_call.1']
    %9 = vsyncpa [#allocation3], 0
    %10 = vsyncpa [#allocation5], 0
    // Predicated region
    $region2: #{tpu_custom_call.1} parent=1 // pred_check
      _
    $region3: #{tpu_custom_call.1} parent=1 // pred_check_branch
      %12 = sbr.rel (0) target = $region5
    $region4: #{tpu_custom_call.1} parent=1 // pred_region
      _
    $region5: #{tpu_custom_call.1} parent=1 // pred_fallthru
      _
    // Predicated region
    $region6: #{tpu_custom_call.1} parent=1 // pred_check
      _
    $region7: #{tpu_custom_call.1} parent=1 // pred_check_branch
      %14 = sbr.rel (0) target = $region9
    $region8: #{tpu_custom_call.1} parent=1 // pred_region
      _
    $region9: #{tpu_custom_call.1} parent=1 // pred_fallthru
      _
    %v15 = vld [vmem:[%s0] sm:$0xff]
    %v16 = vld [vmem:[%s0 + $0x8] sm:$0xff]
    %v17 = vld [vmem:[%s0 + $0x10] sm:$0xff]
    %v18 = vld [vmem:[%s0 + $0x18] sm:$0xff]
    %v19 = vld [vmem:[%s0 + $0x20] sm:$0xff]
    %v20 = vld [vmem:[%s0 + $0x28] sm:$0xff]
    %v21 = vld [vmem:[%s0 + $0x30] sm:$0xff]
    %v22 = vld [vmem:[%s0 + $0x38] sm:$0xff]
    %v23 = vld [vmem:[%s0 + $0x40] sm:$0xff]
    %v24 = vld [vmem:[%s0 + $0x48] sm:$0xff]
    %v25 = vld [vmem:[%s0 + $0x50] sm:$0xff]
    %v26 = vld [vmem:[%s0 + $0x58] sm:$0xff]
    %v27 = vld [vmem:[%s0 + $0x60] sm:$0xff]
    %v28 = vld [vmem:[%s0 + $0x68] sm:$0xff]
    %v29 = vld [vmem:[%s0 + $0x70] sm:$0xff]
    %v30 = vld [vmem:[%s0 + $0x78] sm:$0xff]
    %v31 = vld [vmem:[%s0 + $0x80] sm:$0xff]
    %v32 = vld [vmem:[%s0 + $0x88] sm:$0xff]
    %v33 = vld [vmem:[%s0 + $0x90] sm:$0xff]
    %v34 = vld [vmem:[%s0 + $0x98] sm:$0xff]
    %v35 = vld [vmem:[%s0 + $0xa0] sm:$0xff]
    %v36 = vld [vmem:[%s0 + $0xa8] sm:$0xff]
    %v37 = vld [vmem:[%s0 + $0xb0] sm:$0xff]
    %v38 = vld [vmem:[%s0 + $0xb8] sm:$0xff]
    %v39 = vld [vmem:[%s0 + $0xc0] sm:$0xff]
    %v40 = vld [vmem:[%s0 + $0xc8] sm:$0xff]
    %v41 = vld [vmem:[%s0 + $0xd0] sm:$0xff]
    %v42 = vld [vmem:[%s0 + $0xd8] sm:$0xff]
    %v43 = vld [vmem:[%s0 + $0xe0] sm:$0xff]
    %v44 = vld [vmem:[%s0 + $0xe8] sm:$0xff]
    %v45 = vld [vmem:[%s0 + $0xf0] sm:$0xff]
    %v46 = vld [vmem:[%s0 + $0xf8] sm:$0xff]
    %v47 = vld [vmem:[%s0 + $0x100] sm:$0xff]
    %v48 = vld [vmem:[%s0 + $0x108] sm:$0xff]
    %v49 = vld [vmem:[%s0 + $0x110] sm:$0xff]
    %v50 = vld [vmem:[%s0 + $0x118] sm:$0xff]
    %v51 = vld [vmem:[%s0 + $0x120] sm:$0xff]
    %v52 = vld [vmem:[%s0 + $0x128] sm:$0xff]
    %v53 = vld [vmem:[%s0 + $0x130] sm:$0xff]
    %v54 = vld [vmem:[%s0 + $0x138] sm:$0xff]
    %v55 = vld [vmem:[%s0 + $0x140] sm:$0xff]
    %v56 = vld [vmem:[%s0 + $0x148] sm:$0xff]
    %v57 = vld [vmem:[%s0 + $0x150] sm:$0xff]
    %v58 = vld [vmem:[%s0 + $0x158] sm:$0xff]
    %v59 = vld [vmem:[%s0 + $0x160] sm:$0xff]
    %v60 = vld [vmem:[%s0 + $0x168] sm:$0xff]
    %v61 = vld [vmem:[%s0 + $0x170] sm:$0xff]
    %v62 = vld [vmem:[%s0 + $0x178] sm:$0xff]
    %v63 = vld [vmem:[%s0 + $0x180] sm:$0xff]
    %v64 = vld [vmem:[%s0 + $0x188] sm:$0xff]
    %v65 = vld [vmem:[%s0 + $0x190] sm:$0xff]
    %v66 = vld [vmem:[%s0 + $0x198] sm:$0xff]
    %v67 = vld [vmem:[%s0 + $0x1a0] sm:$0xff]
    %v68 = vld [vmem:[%s0 + $0x1a8] sm:$0xff]
    %v69 = vld [vmem:[%s0 + $0x1b0] sm:$0xff]
    %v70 = vld [vmem:[%s0 + $0x1b8] sm:$0xff]
    %v71 = vld [vmem:[%s0 + $0x1c0] sm:$0xff]
    %v72 = vld [vmem:[%s0 + $0x1c8] sm:$0xff]
    %v73 = vld [vmem:[%s0 + $0x1d0] sm:$0xff]
    %v74 = vld [vmem:[%s0 + $0x1d8] sm:$0xff]
    %v75 = vld [vmem:[%s0 + $0x1e0] sm:$0xff]
    %v76 = vld [vmem:[%s0 + $0x1e8] sm:$0xff]
    %v77 = vld [vmem:[%s0 + $0x1f0] sm:$0xff]
    %v78 = vld [vmem:[%s0 + $0x1f8] sm:$0xff]
    %v79 = vld [vmem:[%s1] sm:$0xff]
    %v80 = vld [vmem:[%s1 + $0x8] sm:$0xff]
    %v81 = vld [vmem:[%s1 + $0x10] sm:$0xff]
    %v82 = vld [vmem:[%s1 + $0x18] sm:$0xff]
    %v83 = vld [vmem:[%s1 + $0x20] sm:$0xf]
    %vm84 = vcmask 293888
    %v86 = vsel %vm84, %v15, 0
    %v89 = vsel %vm84, %v16, 0
    %v92 = vsel %vm84, %v17, 0
    %v95 = vsel %vm84, %v18, 0
    %v98 = vsel %vm84, %v19, 0
    %v101 = vsel %vm84, %v20, 0
    %v104 = vsel %vm84, %v21, 0
    %v107 = vsel %vm84, %v22, 0
    %v110 = vsel %vm84, %v23, 0
    %v113 = vsel %vm84, %v24, 0
    %v116 = vsel %vm84, %v25, 0
    %v119 = vsel %vm84, %v26, 0
    %v122 = vsel %vm84, %v27, 0
    %v125 = vsel %vm84, %v28, 0
    %v128 = vsel %vm84, %v29, 0
    %v131 = vsel %vm84, %v30, 0
    %v134 = vsel %vm84, %v31, 0
    %v137 = vsel %vm84, %v32, 0
    %v140 = vsel %vm84, %v33, 0
    %v143 = vsel %vm84, %v34, 0
    %v146 = vsel %vm84, %v35, 0
    %v149 = vsel %vm84, %v36, 0
    %v152 = vsel %vm84, %v37, 0
    %v155 = vsel %vm84, %v38, 0
    %v158 = vsel %vm84, %v39, 0
    %v161 = vsel %vm84, %v40, 0
    %v164 = vsel %vm84, %v41, 0
    %v167 = vsel %vm84, %v42, 0
    %v170 = vsel %vm84, %v43, 0
    %v173 = vsel %vm84, %v44, 0
    %v176 = vsel %vm84, %v45, 0
    %v179 = vsel %vm84, %v46, 0
    %v182 = vsel %vm84, %v47, 0
    %v185 = vsel %vm84, %v48, 0
    %v188 = vsel %vm84, %v49, 0
    %v191 = vsel %vm84, %v50, 0
    %v194 = vsel %vm84, %v51, 0
    %v197 = vsel %vm84, %v52, 0
    %v200 = vsel %vm84, %v53, 0
    %v203 = vsel %vm84, %v54, 0
    %v206 = vsel %vm84, %v55, 0
    %v209 = vsel %vm84, %v56, 0
    %v212 = vsel %vm84, %v57, 0
    %v215 = vsel %vm84, %v58, 0
    %v218 = vsel %vm84, %v59, 0
    %v221 = vsel %vm84, %v60, 0
    %v224 = vsel %vm84, %v61, 0
    %v227 = vsel %vm84, %v62, 0
    %v230 = vsel %vm84, %v63, 0
    %v233 = vsel %vm84, %v64, 0
    %v236 = vsel %vm84, %v65, 0
    %v239 = vsel %vm84, %v66, 0
    %v242 = vsel %vm84, %v67, 0
    %v245 = vsel %vm84, %v68, 0
    %v248 = vsel %vm84, %v69, 0
    %v251 = vsel %vm84, %v70, 0
    %v254 = vsel %vm84, %v71, 0
    %v257 = vsel %vm84, %v72, 0
    %v260 = vsel %vm84, %v73, 0
    %v263 = vsel %vm84, %v74, 0
    %v266 = vsel %vm84, %v75, 0
    %v269 = vsel %vm84, %v76, 0
    %v272 = vsel %vm84, %v77, 0
    %v275 = vsel %vm84, %v78, 0
    %vm277 = vcmask 1043456
    %v279 = vsel %vm277, %v83, 0
    %281 = vmatpush.msra.mxu0 0.0
    %282 = vmatpush.msra.mxu0 0.0
    %283 = vmatpush.msra.mxu0 0.0
    %284 = vmatpush.msra.mxu0 0.0
    %285 = vmatpush.msra.mxu0 0.0
    %286 = vmatpush.msra.mxu0 0.0
    %287 = vmatpush.msra.mxu0 0.0
    %288 = vmatpush.msra.mxu0 0.0
    %289 = vmatpush.msra.mxu0 0.0
    %290 = vmatpush.msra.mxu0 0.0
    %291 = vmatpush.msra.mxu0 0.0
    %292 = vmatpush.msra.mxu0 %v279
    %293 = vmatpush.msra.mxu0 %v82
    %294 = vmatpush.msra.mxu0 %v81
    %295 = vmatpush.msra.mxu0 %v80
    %296 = vmatpush.msra.mxu0 %v79
    %297 = vmatmul.f32.gmra.mxu0 %v86
    %v298 = vpop.f32.mrf.mxu0
    %v299 = vadd.f32 0.0, %v298
    %300 = vmatmul.f32.gmra.mxu0 %v89
    %v301 = vpop.f32.mrf.mxu0
    %v302 = vadd.f32 0.0, %v301
    %303 = vmatmul.f32.gmra.mxu0 %v92
    %v304 = vpop.f32.mrf.mxu0
    %v305 = vadd.f32 0.0, %v304
    %306 = vmatmul.f32.gmra.mxu0 %v95
    %v307 = vpop.f32.mrf.mxu0
    %v308 = vadd.f32 0.0, %v307
    %309 = vmatmul.f32.gmra.mxu0 %v98
    %v310 = vpop.f32.mrf.mxu0
    %v311 = vadd.f32 0.0, %v310
    %312 = vmatmul.f32.gmra.mxu0 %v101
    %v313 = vpop.f32.mrf.mxu0
    %v314 = vadd.f32 0.0, %v313
    %315 = vmatmul.f32.gmra.mxu0 %v104
    %v316 = vpop.f32.mrf.mxu0
    %v317 = vadd.f32 0.0, %v316
    %318 = vmatmul.f32.gmra.mxu0 %v107
    %v319 = vpop.f32.mrf.mxu0
    %v320 = vadd.f32 0.0, %v319
    %321 = vmatmul.f32.gmra.mxu0 %v110
    %v322 = vpop.f32.mrf.mxu0
    %v323 = vadd.f32 0.0, %v322
    %324 = vmatmul.f32.gmra.mxu0 %v113
    %v325 = vpop.f32.mrf.mxu0
    %v326 = vadd.f32 0.0, %v325
    %327 = vmatmul.f32.gmra.mxu0 %v116
    %v328 = vpop.f32.mrf.mxu0
    %v329 = vadd.f32 0.0, %v328
    %330 = vmatmul.f32.gmra.mxu0 %v119
    %v331 = vpop.f32.mrf.mxu0
    %v332 = vadd.f32 0.0, %v331
    %333 = vmatmul.f32.gmra.mxu0 %v122
    %v334 = vpop.f32.mrf.mxu0
    %v335 = vadd.f32 0.0, %v334
    %336 = vmatmul.f32.gmra.mxu0 %v125
    %v337 = vpop.f32.mrf.mxu0
    %v338 = vadd.f32 0.0, %v337
    %339 = vmatmul.f32.gmra.mxu0 %v128
    %v340 = vpop.f32.mrf.mxu0
    %v341 = vadd.f32 0.0, %v340
    %342 = vmatmul.f32.gmra.mxu0 %v131
    %v343 = vpop.f32.mrf.mxu0
    %v344 = vadd.f32 0.0, %v343
    %345 = vmatmul.f32.gmra.mxu0 %v134
    %v346 = vpop.f32.mrf.mxu0
    %v347 = vadd.f32 0.0, %v346
    %348 = vmatmul.f32.gmra.mxu0 %v137
    %v349 = vpop.f32.mrf.mxu0
    %v350 = vadd.f32 0.0, %v349
    %351 = vmatmul.f32.gmra.mxu0 %v140
    %v352 = vpop.f32.mrf.mxu0
    %v353 = vadd.f32 0.0, %v352
    %354 = vmatmul.f32.gmra.mxu0 %v143
    %v355 = vpop.f32.mrf.mxu0
    %v356 = vadd.f32 0.0, %v355
    %357 = vmatmul.f32.gmra.mxu0 %v146
    %v358 = vpop.f32.mrf.mxu0
    %v359 = vadd.f32 0.0, %v358
    %360 = vmatmul.f32.gmra.mxu0 %v149
    %v361 = vpop.f32.mrf.mxu0
    %v362 = vadd.f32 0.0, %v361
    %363 = vmatmul.f32.gmra.mxu0 %v152
    %v364 = vpop.f32.mrf.mxu0
    %v365 = vadd.f32 0.0, %v364
    %366 = vmatmul.f32.gmra.mxu0 %v155
    %v367 = vpop.f32.mrf.mxu0
    %v368 = vadd.f32 0.0, %v367
    %369 = vmatmul.f32.gmra.mxu0 %v158
    %v370 = vpop.f32.mrf.mxu0
    %v371 = vadd.f32 0.0, %v370
    %372 = vmatmul.f32.gmra.mxu0 %v161
    %v373 = vpop.f32.mrf.mxu0
    %v374 = vadd.f32 0.0, %v373
    %375 = vmatmul.f32.gmra.mxu0 %v164
    %v376 = vpop.f32.mrf.mxu0
    %v377 = vadd.f32 0.0, %v376
    %378 = vmatmul.f32.gmra.mxu0 %v167
    %v379 = vpop.f32.mrf.mxu0
    %v380 = vadd.f32 0.0, %v379
    %381 = vmatmul.f32.gmra.mxu0 %v170
    %v382 = vpop.f32.mrf.mxu0
    %v383 = vadd.f32 0.0, %v382
    %384 = vmatmul.f32.gmra.mxu0 %v173
    %v385 = vpop.f32.mrf.mxu0
    %v386 = vadd.f32 0.0, %v385
    %387 = vmatmul.f32.gmra.mxu0 %v176
    %v388 = vpop.f32.mrf.mxu0
    %v389 = vadd.f32 0.0, %v388
    %390 = vmatmul.f32.gmra.mxu0 %v179
    %v391 = vpop.f32.mrf.mxu0
    %v392 = vadd.f32 0.0, %v391
    %393 = vmatmul.f32.gmra.mxu0 %v182
    %v394 = vpop.f32.mrf.mxu0
    %v395 = vadd.f32 0.0, %v394
    %396 = vmatmul.f32.gmra.mxu0 %v185
    %v397 = vpop.f32.mrf.mxu0
    %v398 = vadd.f32 0.0, %v397
    %399 = vmatmul.f32.gmra.mxu0 %v188
    %v400 = vpop.f32.mrf.mxu0
    %v401 = vadd.f32 0.0, %v400
    %402 = vmatmul.f32.gmra.mxu0 %v191
    %v403 = vpop.f32.mrf.mxu0
    %v404 = vadd.f32 0.0, %v403
    %405 = vmatmul.f32.gmra.mxu0 %v194
    %v406 = vpop.f32.mrf.mxu0
    %v407 = vadd.f32 0.0, %v406
    %408 = vmatmul.f32.gmra.mxu0 %v197
    %v409 = vpop.f32.mrf.mxu0
    %v410 = vadd.f32 0.0, %v409
    %411 = vmatmul.f32.gmra.mxu0 %v200
    %v412 = vpop.f32.mrf.mxu0
    %v413 = vadd.f32 0.0, %v412
    %414 = vmatmul.f32.gmra.mxu0 %v203
    %v415 = vpop.f32.mrf.mxu0
    %v416 = vadd.f32 0.0, %v415
    %417 = vmatmul.f32.gmra.mxu0 %v206
    %v418 = vpop.f32.mrf.mxu0
    %v419 = vadd.f32 0.0, %v418
    %420 = vmatmul.f32.gmra.mxu0 %v209
    %v421 = vpop.f32.mrf.mxu0
    %v422 = vadd.f32 0.0, %v421
    %423 = vmatmul.f32.gmra.mxu0 %v212
    %v424 = vpop.f32.mrf.mxu0
    %v425 = vadd.f32 0.0, %v424
    %426 = vmatmul.f32.gmra.mxu0 %v215
    %v427 = vpop.f32.mrf.mxu0
    %v428 = vadd.f32 0.0, %v427
    %429 = vmatmul.f32.gmra.mxu0 %v218
    %v430 = vpop.f32.mrf.mxu0
    %v431 = vadd.f32 0.0, %v430
    %432 = vmatmul.f32.gmra.mxu0 %v221
    %v433 = vpop.f32.mrf.mxu0
    %v434 = vadd.f32 0.0, %v433
    %435 = vmatmul.f32.gmra.mxu0 %v224
    %v436 = vpop.f32.mrf.mxu0
    %v437 = vadd.f32 0.0, %v436
    %438 = vmatmul.f32.gmra.mxu0 %v227
    %v439 = vpop.f32.mrf.mxu0
    %v440 = vadd.f32 0.0, %v439
    %441 = vmatmul.f32.gmra.mxu0 %v230
    %v442 = vpop.f32.mrf.mxu0
    %v443 = vadd.f32 0.0, %v442
    %444 = vmatmul.f32.gmra.mxu0 %v233
    %v445 = vpop.f32.mrf.mxu0
    %v446 = vadd.f32 0.0, %v445
    %447 = vmatmul.f32.gmra.mxu0 %v236
    %v448 = vpop.f32.mrf.mxu0
    %v449 = vadd.f32 0.0, %v448
    %450 = vmatmul.f32.gmra.mxu0 %v239
    %v451 = vpop.f32.mrf.mxu0
    %v452 = vadd.f32 0.0, %v451
    %453 = vmatmul.f32.gmra.mxu0 %v242
    %v454 = vpop.f32.mrf.mxu0
    %v455 = vadd.f32 0.0, %v454
    %456 = vmatmul.f32.gmra.mxu0 %v245
    %v457 = vpop.f32.mrf.mxu0
    %v458 = vadd.f32 0.0, %v457
    %459 = vmatmul.f32.gmra.mxu0 %v248
    %v460 = vpop.f32.mrf.mxu0
    %v461 = vadd.f32 0.0, %v460
    %462 = vmatmul.f32.gmra.mxu0 %v251
    %v463 = vpop.f32.mrf.mxu0
    %v464 = vadd.f32 0.0, %v463
    %465 = vmatmul.f32.gmra.mxu0 %v254
    %v466 = vpop.f32.mrf.mxu0
    %v467 = vadd.f32 0.0, %v466
    %468 = vmatmul.f32.gmra.mxu0 %v257
    %v469 = vpop.f32.mrf.mxu0
    %v470 = vadd.f32 0.0, %v469
    %471 = vmatmul.f32.gmra.mxu0 %v260
    %v472 = vpop.f32.mrf.mxu0
    %v473 = vadd.f32 0.0, %v472
    %474 = vmatmul.f32.gmra.mxu0 %v263
    %v475 = vpop.f32.mrf.mxu0
    %v476 = vadd.f32 0.0, %v475
    %477 = vmatmul.f32.gmra.mxu0 %v266
    %v478 = vpop.f32.mrf.mxu0
    %v479 = vadd.f32 0.0, %v478
    %480 = vmatmul.f32.gmra.mxu0 %v269
    %v481 = vpop.f32.mrf.mxu0
    %v482 = vadd.f32 0.0, %v481
    %483 = vmatmul.f32.gmra.mxu0 %v272
    %v484 = vpop.f32.mrf.mxu0
    %v485 = vadd.f32 0.0, %v484
    %486 = vmatmul.f32.gmra.mxu0 %v275
    %v487 = vpop.f32.mrf.mxu0
    %v488 = vadd.f32 0.0, %v487
    %489 = vdwg.mxu0
    %p490 = scmp.eq.s32.totalorder 0, 0
    // Predicated region
    $region10: #{tpu_custom_call.1} parent=1 // pred_check
      %p491 = pneg %p490
    $region11: #{tpu_custom_call.1} parent=1 // pred_check_branch
      %493 = sbr.rel (%p491) target = $region13
    $region12: #{tpu_custom_call.1} parent=1 // pred_region
      %494 = vst [vmem:[#allocation2] sm:$0x1] 0.0
      %495 = vst [vmem:[#allocation4] sm:$0x1] 0.0
    $region13: #{tpu_custom_call.1} parent=1 // pred_fallthru
      _
    %v496 = vld [vmem:[#allocation2] sm:$0x1]
    %v497 = vadd.f32 %v299, %v302
    %v498 = vadd.f32 %v497, %v305
    %v499 = vadd.f32 %v498, %v308
    %v500 = vadd.f32 %v499, %v311
    %v501 = vadd.f32 %v500, %v314
    %v502 = vadd.f32 %v501, %v317
    %v503 = vadd.f32 %v502, %v320
    %v504 = vadd.f32 %v503, %v323
    %v505 = vadd.f32 %v504, %v326
    %v506 = vadd.f32 %v505, %v329
    %v507 = vadd.f32 %v506, %v332
    %v508 = vadd.f32 %v507, %v335
    %v509 = vadd.f32 %v508, %v338
    %v510 = vadd.f32 %v509, %v341
    %v511 = vadd.f32 %v510, %v344
    %v512 = vadd.f32 %v511, %v347
    %v513 = vadd.f32 %v512, %v350
    %v514 = vadd.f32 %v513, %v353
    %v515 = vadd.f32 %v514, %v356
    %v516 = vadd.f32 %v515, %v359
    %v517 = vadd.f32 %v516, %v362
    %v518 = vadd.f32 %v517, %v365
    %v519 = vadd.f32 %v518, %v368
    %v520 = vadd.f32 %v519, %v371
    %v521 = vadd.f32 %v520, %v374
    %v522 = vadd.f32 %v521, %v377
    %v523 = vadd.f32 %v522, %v380
    %v524 = vadd.f32 %v523, %v383
    %v525 = vadd.f32 %v524, %v386
    %v526 = vadd.f32 %v525, %v389
    %v527 = vadd.f32 %v526, %v392
    %v528 = vadd.f32 %v527, %v395
    %v529 = vadd.f32 %v528, %v398
    %v530 = vadd.f32 %v529, %v401
    %v531 = vadd.f32 %v530, %v404
    %v532 = vadd.f32 %v531, %v407
    %v533 = vadd.f32 %v532, %v410
    %v534 = vadd.f32 %v533, %v413
    %v535 = vadd.f32 %v534, %v416
    %v536 = vadd.f32 %v535, %v419
    %v537 = vadd.f32 %v536, %v422
    %v538 = vadd.f32 %v537, %v425
    %v539 = vadd.f32 %v538, %v428
    %v540 = vadd.f32 %v539, %v431
    %v541 = vadd.f32 %v540, %v434
    %v542 = vadd.f32 %v541, %v437
    %v543 = vadd.f32 %v542, %v440
    %v544 = vadd.f32 %v543, %v443
    %v545 = vadd.f32 %v544, %v446
    %v546 = vadd.f32 %v545, %v449
    %v547 = vadd.f32 %v546, %v452
    %v548 = vadd.f32 %v547, %v455
    %v549 = vadd.f32 %v548, %v458
    %v550 = vadd.f32 %v549, %v461
    %v551 = vadd.f32 %v550, %v464
    %v552 = vadd.f32 %v551, %v467
    %v553 = vadd.f32 %v552, %v470
    %v554 = vadd.f32 %v553, %v473
    %v555 = vadd.f32 %v554, %v476
    %v556 = vadd.f32 %v555, %v479
    %v557 = vadd.f32 %v556, %v482
    %v558 = vadd.f32 %v557, %v485
    %v559 = vadd.f32 %v558, %v488
    %v560 = vrot.slane %v559, 4
    %v561 = vadd.f32 %v559, %v560
    %v562 = vrot.slane %v561, 2
    %v563 = vadd.f32 %v561, %v562
    %v564 = vrot.slane %v563, 1
    %v565 = vadd.f32 %v563, %v564
    %v566 = vadd.f32 %v496, %v565
    %567 = vst [vmem:[#allocation2] sm:$0x1] %v566
    %v568 = vld [vmem:[#allocation4] sm:$0x1]
    %v569 = vmul.f32 %v299, %v299
    %v570 = vmul.f32 %v302, %v302
    %v571 = vmul.f32 %v305, %v305
    %v572 = vmul.f32 %v308, %v308
    %v573 = vmul.f32 %v311, %v311
    %v574 = vmul.f32 %v314, %v314
    %v575 = vmul.f32 %v317, %v317
    %v576 = vmul.f32 %v320, %v320
    %v577 = vmul.f32 %v323, %v323
    %v578 = vmul.f32 %v326, %v326
    %v579 = vmul.f32 %v329, %v329
    %v580 = vmul.f32 %v332, %v332
    %v581 = vmul.f32 %v335, %v335
    %v582 = vmul.f32 %v338, %v338
    %v583 = vmul.f32 %v341, %v341
    %v584 = vmul.f32 %v344, %v344
    %v585 = vmul.f32 %v347, %v347
    %v586 = vmul.f32 %v350, %v350
    %v587 = vmul.f32 %v353, %v353
    %v588 = vmul.f32 %v356, %v356
    %v589 = vmul.f32 %v359, %v359
    %v590 = vmul.f32 %v362, %v362
    %v591 = vmul.f32 %v365, %v365
    %v592 = vmul.f32 %v368, %v368
    %v593 = vmul.f32 %v371, %v371
    %v594 = vmul.f32 %v374, %v374
    %v595 = vmul.f32 %v377, %v377
    %v596 = vmul.f32 %v380, %v380
    %v597 = vmul.f32 %v383, %v383
    %v598 = vmul.f32 %v386, %v386
    %v599 = vmul.f32 %v389, %v389
    %v600 = vmul.f32 %v392, %v392
    %v601 = vmul.f32 %v395, %v395
    %v602 = vmul.f32 %v398, %v398
    %v603 = vmul.f32 %v401, %v401
    %v604 = vmul.f32 %v404, %v404
    %v605 = vmul.f32 %v407, %v407
    %v606 = vmul.f32 %v410, %v410
    %v607 = vmul.f32 %v413, %v413
    %v608 = vmul.f32 %v416, %v416
    %v609 = vmul.f32 %v419, %v419
    %v610 = vmul.f32 %v422, %v422
    %v611 = vmul.f32 %v425, %v425
    %v612 = vmul.f32 %v428, %v428
    %v613 = vmul.f32 %v431, %v431
    %v614 = vmul.f32 %v434, %v434
    %v615 = vmul.f32 %v437, %v437
    %v616 = vmul.f32 %v440, %v440
    %v617 = vmul.f32 %v443, %v443
    %v618 = vmul.f32 %v446, %v446
    %v619 = vmul.f32 %v449, %v449
    %v620 = vmul.f32 %v452, %v452
    %v621 = vmul.f32 %v455, %v455
    %v622 = vmul.f32 %v458, %v458
    %v623 = vmul.f32 %v461, %v461
    %v624 = vmul.f32 %v464, %v464
    %v625 = vmul.f32 %v467, %v467
    %v626 = vmul.f32 %v470, %v470
    %v627 = vmul.f32 %v473, %v473
    %v628 = vmul.f32 %v476, %v476
    %v629 = vmul.f32 %v479, %v479
    %v630 = vmul.f32 %v482, %v482
    %v631 = vmul.f32 %v485, %v485
    %v632 = vmul.f32 %v488, %v488
    %v633 = vadd.f32 %v569, %v570
    %v634 = vadd.f32 %v633, %v571
    %v635 = vadd.f32 %v634, %v572
    %v636 = vadd.f32 %v635, %v573
    %v637 = vadd.f32 %v636, %v574
    %v638 = vadd.f32 %v637, %v575
    %v639 = vadd.f32 %v638, %v576
    %v640 = vadd.f32 %v639, %v577
    %v641 = vadd.f32 %v640, %v578
    %v642 = vadd.f32 %v641, %v579
    %v643 = vadd.f32 %v642, %v580
    %v644 = vadd.f32 %v643, %v581
    %v645 = vadd.f32 %v644, %v582
    %v646 = vadd.f32 %v645, %v583
    %v647 = vadd.f32 %v646, %v584
    %v648 = vadd.f32 %v647, %v585
    %v649 = vadd.f32 %v648, %v586
    %v650 = vadd.f32 %v649, %v587
    %v651 = vadd.f32 %v650, %v588
    %v652 = vadd.f32 %v651, %v589
    %v653 = vadd.f32 %v652, %v590
    %v654 = vadd.f32 %v653, %v591
    %v655 = vadd.f32 %v654, %v592
    %v656 = vadd.f32 %v655, %v593
    %v657 = vadd.f32 %v656, %v594
    %v658 = vadd.f32 %v657, %v595
    %v659 = vadd.f32 %v658, %v596
    %v660 = vadd.f32 %v659, %v597
    %v661 = vadd.f32 %v660, %v598
    %v662 = vadd.f32 %v661, %v599
    %v663 = vadd.f32 %v662, %v600
    %v664 = vadd.f32 %v663, %v601
    %v665 = vadd.f32 %v664, %v602
    %v666 = vadd.f32 %v665, %v603
    %v667 = vadd.f32 %v666, %v604
    %v668 = vadd.f32 %v667, %v605
    %v669 = vadd.f32 %v668, %v606
    %v670 = vadd.f32 %v669, %v607
    %v671 = vadd.f32 %v670, %v608
    %v672 = vadd.f32 %v671, %v609
    %v673 = vadd.f32 %v672, %v610
    %v674 = vadd.f32 %v673, %v611
    %v675 = vadd.f32 %v674, %v612
    %v676 = vadd.f32 %v675, %v613
    %v677 = vadd.f32 %v676, %v614
    %v678 = vadd.f32 %v677, %v615
    %v679 = vadd.f32 %v678, %v616
    %v680 = vadd.f32 %v679, %v617
    %v681 = vadd.f32 %v680, %v618
    %v682 = vadd.f32 %v681, %v619
    %v683 = vadd.f32 %v682, %v620
    %v684 = vadd.f32 %v683, %v621
    %v685 = vadd.f32 %v684, %v622
    %v686 = vadd.f32 %v685, %v623
    %v687 = vadd.f32 %v686, %v624
    %v688 = vadd.f32 %v687, %v625
    %v689 = vadd.f32 %v688, %v626
    %v690 = vadd.f32 %v689, %v627
    %v691 = vadd.f32 %v690, %v628
    %v692 = vadd.f32 %v691, %v629
    %v693 = vadd.f32 %v692, %v630
    %v694 = vadd.f32 %v693, %v631
    %v695 = vadd.f32 %v694, %v632
    %v696 = vrot.slane %v695, 4
    %v697 = vadd.f32 %v695, %v696
    %v698 = vrot.slane %v697, 2
    %v699 = vadd.f32 %v697, %v698
    %v700 = vrot.slane %v699, 1
    %v701 = vadd.f32 %v699, %v700
    %v702 = vadd.f32 %v568, %v701
    %703 = vst [vmem:[#allocation4] sm:$0x1] %v702
    // Predicated region
    $region14: #{tpu_custom_call.1} parent=1 // pred_check
      _
    $region15: #{tpu_custom_call.1} parent=1 // pred_check_branch
      %705 = sbr.rel (0) target = $region17
    $region16: #{tpu_custom_call.1} parent=1 // pred_region
      %707 = vsyncadd [#allocation3], 0
      %s709 = sshll.u32 [#allocation2], 4
      %s710 = int_to_ptr.vmem [resolvable:$true] %s709
      %s711 = sshll.u32 %s2, 4
      %s712 = int_to_ptr.hbm [resolvable:$true] %s711
      %714 = dma.vmem_to_hbm [thread:$0]  %s710, 16, %s712, [#allocation3]
    $region17: #{tpu_custom_call.1} parent=1 // pred_fallthru
      _
    // Predicated region
    $region18: #{tpu_custom_call.1} parent=1 // pred_check
      _
    $region19: #{tpu_custom_call.1} parent=1 // pred_check_branch
      %716 = sbr.rel (0) target = $region21
    $region20: #{tpu_custom_call.1} parent=1 // pred_region
      %718 = vsyncadd [#allocation5], 0
      %s720 = sshll.u32 [#allocation4], 4
      %s721 = int_to_ptr.vmem [resolvable:$true] %s720
      %s722 = sshll.u32 %s3, 4
      %s723 = int_to_ptr.hbm [resolvable:$true] %s722
      %725 = dma.vmem_to_hbm [thread:$0]  %s721, 16, %s723, [#allocation5]
    $region21: #{tpu_custom_call.1} parent=1 // pred_fallthru
      _
    // Predicated region
    $region22: #{tpu_custom_call.1} parent=1 // pred_check
      _
    $region23: #{tpu_custom_call.1} parent=1 // pred_check_branch
      %727 = sbr.rel (0) target = $region25
    $region24: #{tpu_custom_call.1} parent=1 // pred_region
      %729 = dma.done [#allocation3], 16
    $region25: #{tpu_custom_call.1} parent=1 // pred_fallthru
      _
    // Predicated region
    $region26: #{tpu_custom_call.1} parent=1 // pred_check
      _
    $region27: #{tpu_custom_call.1} parent=1 // pred_check_branch
      %731 = sbr.rel (0) target = $region29
    $region28: #{tpu_custom_call.1} parent=1 // pred_region
      %733 = dma.done [#allocation5], 16
    $region29: #{tpu_custom_call.1} parent=1 // pred_fallthru
      _
    %734 = vsyncpa [#allocation3], 1
    %735 = vsyncpa [#allocation5], 1

</llo_original>
